<compile_context>
chip_gen: v5e
topology: v5e:2x2
jax: 0.10.0
libtpu: 0.0.40
codegen_flags: <defaults>
</compile_context>

<pallas_src>
import jax
import jax.numpy as jnp
import numpy as np
from jax.experimental import pallas as pl
from jax.experimental.pallas import tpu as pltpu


def _diffusion_loss_kernel(
    x_ref,      # VMEM (TB*C, P)        clean input slab (batch-major rows)
    n_ref,      # VMEM (TB*C, P)        gaussian noise slab
    sa_ref,     # VMEM (TB*C, 1)        sqrt(alphas_cumprod[t]) per row
    sb_ref,     # VMEM (TB*C, 1)        sqrt(1 - alphas_cumprod[t]) per row
    w1_ref,     # VMEM (TB*hid, TB*C)   block-diag kron(I_TB, w1^T)
    b1_ref,     # VMEM (TB*hid, 1)      b1 + time_emb[t_b] per row
    w2_ref,     # VMEM (TB*C, TB*hid)   block-diag kron(I_TB, w2^T)
    b2_ref,     # VMEM (TB*C, 1)        b2 tiled per batch
    out_ref,    # VMEM (1, 1, P)        lane-dense per-block partial sums
):
    x = x_ref[...]                                   # (TB*C, P)  full sublanes
    n = n_ref[...]

    # ---- q_sample: elementwise on the full-sublane slab (VPU) ----
    x_noisy = sa_ref[...] * x + sb_ref[...] * n      # (TB*C, P)

    # ---- synthetic denoiser: one MXU matmul per layer for all TB batches ----
    h = jnp.dot(w1_ref[...], x_noisy,
                preferred_element_type=jnp.float32)  # (TB*hid, P)
    h = jnp.maximum(h + b1_ref[...], 0.0)
    pred = jnp.dot(w2_ref[...], h,
                   preferred_element_type=jnp.float32)
    pred = pred + b2_ref[...]                        # (TB*C, P)

    # ---- squared error: sublane-axis partial reduce, lane-dense store ----
    diff = pred - n
    partial = jnp.sum(diff * diff, axis=0, keepdims=True)   # (1, P)
    out_ref[...] = partial[None]                             # (1, 1, P)


def _choose_num_blocks(B, C, P, hidden, itemsize=4):
    """Pick the batch-grid length.

    Coarsen as much as possible (per-step overhead ~600 cycles), but keep
    >= 2 parallel blocks once B >= 4 so v7x's two TensorCores both get work,
    cap the batch tile so the block-diag weights stay tiny, and bound the
    per-block footprint to fit the smallest scoped-VMEM budget across
    generations (v5e: 16 MiB default scoped; v7x: 64 MiB physical).
    """
    # Per-batch f32 bytes resident per block: x & noise (2 pipeline buffers
    # each) + x_noisy + pred + hidden activations.
    per_batch = (2 * 2 + 2) * C * P * itemsize + hidden * P * itemsize
    budget = 12 << 20                      # conservative: fits every gen
    min_blocks = max(1, pl.cdiv(B * per_batch, budget))
    want = 2 if B >= 4 else 1              # v7x megacore prefers >= 2 blocks
    want = max(want, pl.cdiv(B, 8))        # keep TB <= 8 (kron'd weights tiny)
    nb = max(min_blocks, want)
    while B % nb:                          # keep the batch tile integral
        nb += 1
    return min(nb, B)


def gaussian_diffusion_loss(x_nchw, t, noise_nchw, params, alphas_cumprod,
                            *, num_blocks=None):
    """p_losses(x, t) == mean((model(q_sample(x,t,noise), t) - noise)^2)."""
    B, C, H, W = x_nchw.shape
    P = H * W
    hidden = params["w1"].shape[1]

    if num_blocks is None:
        num_blocks = _choose_num_blocks(B, C, P, hidden)
    assert B % num_blocks == 0
    TB = B // num_blocks
    R = TB * C                      # slab rows per block
    RH = TB * hidden                # hidden rows per block

    # ----- JAX glue (all tiny and/or free reshapes) -----
    x_slab = x_nchw.reshape(B * C, P)           # free reshape of NCHW
    n_slab = noise_nchw.reshape(B * C, P)

    acp_t = alphas_cumprod[t].astype(jnp.float32)                    # (B,)
    sa = jnp.repeat(jnp.sqrt(acp_t), C).reshape(B * C, 1)            # per-row
    sb = jnp.repeat(jnp.sqrt(1.0 - acp_t), C).reshape(B * C, 1)

    eye_tb = jnp.eye(TB, dtype=jnp.float32)
    w1k = jnp.kron(eye_tb, params["w1"].T.astype(jnp.float32))       # (RH, R)
    w2k = jnp.kron(eye_tb, params["w2"].T.astype(jnp.float32))       # (R, RH)
    b1col = (params["b1"].reshape(1, hidden)
             + params["time_emb"][t]).astype(jnp.float32).reshape(B * hidden, 1)
    b2col = jnp.tile(params["b2"].reshape(C, 1).astype(jnp.float32), (TB, 1))

    partials = pl.pallas_call(
        _diffusion_loss_kernel,
        out_shape=jax.ShapeDtypeStruct((num_blocks, 1, P), jnp.float32),
        grid_spec=pltpu.PrefetchScalarGridSpec(
            num_scalar_prefetch=0,
            grid=(num_blocks,),
            in_specs=[
                pl.BlockSpec((R, P), lambda g: (g, 0)),      # x slab
                pl.BlockSpec((R, P), lambda g: (g, 0)),      # noise slab
                pl.BlockSpec((R, 1), lambda g: (g, 0)),      # sqrt(acp)
                pl.BlockSpec((R, 1), lambda g: (g, 0)),      # sqrt(1-acp)
                pl.BlockSpec((RH, R), lambda g: (0, 0)),     # block-diag w1^T
                pl.BlockSpec((RH, 1), lambda g: (g, 0)),     # b1 + time emb
                pl.BlockSpec((R, RH), lambda g: (0, 0)),     # block-diag w2^T
                pl.BlockSpec((R, 1), lambda g: (0, 0)),      # b2
            ],
            out_specs=pl.BlockSpec((1, 1, P), lambda g: (g, 0, 0)),
        ),
        compiler_params=pltpu.CompilerParams(
            dimension_semantics=("parallel",),               # megacore-safe
            vmem_limit_bytes=32 * 1024 * 1024,               # explicit budget
        ),
    )(x_slab, n_slab, sa, sb, w1k, b1col, w2k, b2col)

    total_elems = B * C * P
    return jnp.sum(partials) / jnp.float32(total_elems)


def _reference_loss(x_nchw, t, noise_nchw, params, alphas_cumprod):
    """Pure-JAX reference mirroring the PyTorch module's forward."""
    B, C, H, W = x_nchw.shape
    acp_t = alphas_cumprod[t].astype(jnp.float32).reshape(B, 1, 1, 1)
    x_noisy = jnp.sqrt(acp_t) * x_nchw + jnp.sqrt(1.0 - acp_t) * noise_nchw
    x_bpc = jnp.transpose(x_noisy, (0, 2, 3, 1)).reshape(B, H * W, C)
    h = x_bpc @ params["w1"] + params["b1"] + params["time_emb"][t][:, None, :]
    h = jnp.maximum(h, 0.0)
    pred = h @ params["w2"] + params["b2"]
    n_bpc = jnp.transpose(noise_nchw, (0, 2, 3, 1)).reshape(B, H * W, C)
    return jnp.mean((pred - n_bpc) ** 2)


if __name__ == "__main__":
    B, C, H, W = 2, 4, 16, 16
    hidden = 32
    num_timesteps = 100

    # Deterministic diffusion schedule (linear betas), matching __init__.
    betas = np.linspace(1e-4, 2e-2, num_timesteps, dtype=np.float64)
    alphas = 1.0 - betas
    alphas_cumprod = jnp.asarray(np.cumprod(alphas, axis=0), dtype=jnp.float32)

    key = jax.random.PRNGKey(0)
    k_x, k_noise, k_t, k_w1, k_w2, k_emb = jax.random.split(key, 6)

    x = jax.random.normal(k_x, (B, C, H, W), dtype=jnp.float32)
    noise = jax.random.normal(k_noise, (B, C, H, W), dtype=jnp.float32)
    t = jax.random.randint(k_t, (B,), 0, num_timesteps, dtype=jnp.int32)

    # Deterministic synthetic denoiser parameters.
    params = {
        "w1": jax.random.normal(k_w1, (C, hidden), dtype=jnp.float32) * 0.1,
        "b1": jnp.zeros((1, hidden), dtype=jnp.float32),
        "w2": jax.random.normal(k_w2, (hidden, C), dtype=jnp.float32) * 0.1,
        "b2": jnp.zeros((1, C), dtype=jnp.float32),
        "time_emb": jax.random.normal(
            k_emb, (num_timesteps, hidden), dtype=jnp.float32) * 0.1,
    }

    loss = gaussian_diffusion_loss(x, t, noise, params, alphas_cumprod)
    loss = jax.block_until_ready(loss)

    ref = _reference_loss(x, t, noise, params, alphas_cumprod)
    np.testing.assert_allclose(np.asarray(loss), np.asarray(ref),
                               rtol=2e-5, atol=2e-5)

    print("KERNEL_OK")
</pallas_src>

<mosaic_0001>
module attributes {stable_mosaic.version = 11 : i64} {
  func.func @_diffusion_loss_kernel(%arg0: i32, %arg1: memref<8x256xf32, #tpu.memory_space<vmem>>, %arg2: memref<8x256xf32, #tpu.memory_space<vmem>>, %arg3: memref<8x1xf32, #tpu.memory_space<vmem>>, %arg4: memref<8x1xf32, #tpu.memory_space<vmem>>, %arg5: memref<64x8xf32, #tpu.memory_space<vmem>>, %arg6: memref<64x1xf32, #tpu.memory_space<vmem>>, %arg7: memref<8x64xf32, #tpu.memory_space<vmem>>, %arg8: memref<8x1xf32, #tpu.memory_space<vmem>>, %arg9: memref<1x1x256xf32, #tpu.memory_space<vmem>>) attributes {dimension_semantics = [#tpu.dimension_semantics<parallel>], iteration_bounds = array<i64: 1>, scalar_prefetch = 0 : i64, scratch_operands = 0 : i64, tpu.core_type = #tpu.core_type<tc>, window_params = [{transform_indices = @transform_0, window_bounds = array<i64: 8, 256>}, {transform_indices = @transform_1, window_bounds = array<i64: 8, 256>}, {transform_indices = @transform_2, window_bounds = array<i64: 8, 1>}, {transform_indices = @transform_3, window_bounds = array<i64: 8, 1>}, {pipeline_mode = #tpu.pipeline_mode<synchronous>, transform_indices = @transform_4, window_bounds = array<i64: 64, 8>}, {transform_indices = @transform_5, window_bounds = array<i64: 64, 1>}, {pipeline_mode = #tpu.pipeline_mode<synchronous>, transform_indices = @transform_6, window_bounds = array<i64: 8, 64>}, {pipeline_mode = #tpu.pipeline_mode<synchronous>, transform_indices = @transform_7, window_bounds = array<i64: 8, 1>}, {transform_indices = @transform_8, window_bounds = array<i64: 1, 1, 256>}]} {
    %c0 = arith.constant 0 : index
    %c0_0 = arith.constant 0 : index
    %0 = vector.load %arg1[%c0, %c0_0] : memref<8x256xf32, #tpu.memory_space<vmem>>, vector<8x256xf32>
    %c0_1 = arith.constant 0 : index
    %c0_2 = arith.constant 0 : index
    %1 = vector.load %arg2[%c0_1, %c0_2] : memref<8x256xf32, #tpu.memory_space<vmem>>, vector<8x256xf32>
    %c0_3 = arith.constant 0 : index
    %c0_4 = arith.constant 0 : index
    %2 = vector.load %arg3[%c0_3, %c0_4] : memref<8x1xf32, #tpu.memory_space<vmem>>, vector<8x1xf32>
    %3 = vector.broadcast %2 : vector<8x1xf32> to vector<8x256xf32>
    %4 = arith.mulf %3, %0 : vector<8x256xf32>
    %c0_5 = arith.constant 0 : index
    %c0_6 = arith.constant 0 : index
    %5 = vector.load %arg4[%c0_5, %c0_6] : memref<8x1xf32, #tpu.memory_space<vmem>>, vector<8x1xf32>
    %6 = vector.broadcast %5 : vector<8x1xf32> to vector<8x256xf32>
    %7 = arith.mulf %6, %1 : vector<8x256xf32>
    %8 = arith.addf %4, %7 : vector<8x256xf32>
    %c0_7 = arith.constant 0 : index
    %c0_8 = arith.constant 0 : index
    %9 = vector.load %arg5[%c0_7, %c0_8] : memref<64x8xf32, #tpu.memory_space<vmem>>, vector<64x8xf32>
    %cst = arith.constant dense<0.000000e+00> : vector<64x256xf32>
    %10 = tpu.matmul %9, %8, %cst {dimension_numbers = #tpu.dot_dimension_numbers<[1], [0], [0], [1], [0, 0, 1, 1], [], []>} : vector<64x8xf32>, vector<8x256xf32>, vector<64x256xf32> -> vector<64x256xf32>
    %c0_9 = arith.constant 0 : index
    %c0_10 = arith.constant 0 : index
    %11 = vector.load %arg6[%c0_9, %c0_10] : memref<64x1xf32, #tpu.memory_space<vmem>>, vector<64x1xf32>
    %12 = vector.broadcast %11 : vector<64x1xf32> to vector<64x256xf32>
    %13 = arith.addf %10, %12 : vector<64x256xf32>
    %cst_11 = arith.constant 0.000000e+00 : f32
    %14 = vector.broadcast %cst_11 : f32 to vector<64x256xf32>
    %15 = arith.maximumf %13, %14 : vector<64x256xf32>
    %c0_12 = arith.constant 0 : index
    %c0_13 = arith.constant 0 : index
    %16 = vector.load %arg7[%c0_12, %c0_13] : memref<8x64xf32, #tpu.memory_space<vmem>>, vector<8x64xf32>
    %cst_14 = arith.constant dense<0.000000e+00> : vector<8x256xf32>
    %17 = tpu.matmul %16, %15, %cst_14 {dimension_numbers = #tpu.dot_dimension_numbers<[1], [0], [0], [1], [0, 0, 1, 1], [], []>} : vector<8x64xf32>, vector<64x256xf32>, vector<8x256xf32> -> vector<8x256xf32>
    %c0_15 = arith.constant 0 : index
    %c0_16 = arith.constant 0 : index
    %18 = vector.load %arg8[%c0_15, %c0_16] : memref<8x1xf32, #tpu.memory_space<vmem>>, vector<8x1xf32>
    %19 = vector.broadcast %18 : vector<8x1xf32> to vector<8x256xf32>
    %20 = arith.addf %17, %19 : vector<8x256xf32>
    %21 = arith.subf %20, %1 : vector<8x256xf32>
    %22 = arith.mulf %21, %21 : vector<8x256xf32>
    %cst_17 = arith.constant dense<0.000000e+00> : vector<256xf32>
    %23 = vector.multi_reduction <add>, %22, %cst_17 [0] : vector<8x256xf32> to vector<256xf32>
    %24 = vector.shape_cast %23 : vector<256xf32> to vector<1x256xf32>
    %25 = vector.shape_cast %24 : vector<1x256xf32> to vector<1x1x256xf32>
    %c0_18 = arith.constant 0 : index
    %c0_19 = arith.constant 0 : index
    %c0_20 = arith.constant 0 : index
    %26 = vector.load %arg9[%c0_18, %c0_19, %c0_20] : memref<1x1x256xf32, #tpu.memory_space<vmem>>, vector<1x1x256xf32>
    tpu.vector_store %arg9[%c0_18, %c0_19, %c0_20], %25 {strides = array<i32>} : memref<1x1x256xf32, #tpu.memory_space<vmem>>, vector<1x1x256xf32>,
    return
  }
  func.func @transform_0(%arg0: i32) -> (i32, i32) {
    %c0_i32 = arith.constant 0 : i32
    %c0_i32_0 = arith.constant 0 : i32
    return %arg0, %c0_i32 : i32, i32
  }
  func.func @transform_1(%arg0: i32) -> (i32, i32) {
    %c0_i32 = arith.constant 0 : i32
    %c0_i32_0 = arith.constant 0 : i32
    return %arg0, %c0_i32 : i32, i32
  }
  func.func @transform_2(%arg0: i32) -> (i32, i32) {
    %c0_i32 = arith.constant 0 : i32
    %c0_i32_0 = arith.constant 0 : i32
    return %arg0, %c0_i32 : i32, i32
  }
  func.func @transform_3(%arg0: i32) -> (i32, i32) {
    %c0_i32 = arith.constant 0 : i32
    %c0_i32_0 = arith.constant 0 : i32
    return %arg0, %c0_i32 : i32, i32
  }
  func.func @transform_4(%arg0: i32) -> (i32, i32) {
    %c0_i32 = arith.constant 0 : i32
    %c0_i32_0 = arith.constant 0 : i32
    %c0_i32_1 = arith.constant 0 : i32
    return %c0_i32, %c0_i32_0 : i32, i32
  }
  func.func @transform_5(%arg0: i32) -> (i32, i32) {
    %c0_i32 = arith.constant 0 : i32
    %c0_i32_0 = arith.constant 0 : i32
    return %arg0, %c0_i32 : i32, i32
  }
  func.func @transform_6(%arg0: i32) -> (i32, i32) {
    %c0_i32 = arith.constant 0 : i32
    %c0_i32_0 = arith.constant 0 : i32
    %c0_i32_1 = arith.constant 0 : i32
    return %c0_i32, %c0_i32_0 : i32, i32
  }
  func.func @transform_7(%arg0: i32) -> (i32, i32) {
    %c0_i32 = arith.constant 0 : i32
    %c0_i32_0 = arith.constant 0 : i32
    %c0_i32_1 = arith.constant 0 : i32
    return %c0_i32, %c0_i32_0 : i32, i32
  }
  func.func @transform_8(%arg0: i32) -> (i32, i32, i32) {
    %c0_i32 = arith.constant 0 : i32
    %c0_i32_0 = arith.constant 0 : i32
    %c0_i32_1 = arith.constant 0 : i32
    return %arg0, %c0_i32, %c0_i32_0 : i32, i32, i32
  }
}

</mosaic_0001>

<llo_original>
// kernel: tpu_custom_call.1
$region0: #{tpu_custom_call.1}
  #allocation0 [shape = 'u32[]', space=smem, size = 0x4, offset = 0x4, fixed_abs, tag = 'smem constant byte address 0x4 - core index']
  #allocation1 [shape = 'u32[72,128]{1,0:T(1,128)}', space=vmem, size = 0x9000, scoped, tag = 'internal scratch']
  %s0 = inlined_call_operand.vmem [shape: f32[8,256], index: 0, kind: input, shape index: {}]
  %s1 = inlined_call_operand.vmem [shape: f32[8,256], index: 1, kind: input, shape index: {}]
  %s2 = inlined_call_operand.vmem [shape: f32[8,1], index: 2, kind: input, shape index: {}]
  %s3 = inlined_call_operand.vmem [shape: f32[8,1], index: 3, kind: input, shape index: {}]
  %s4 = inlined_call_operand.vmem [shape: f32[64,8], index: 4, kind: input, shape index: {}]
  %s5 = inlined_call_operand.vmem [shape: f32[64,1], index: 5, kind: input, shape index: {}]
  %s6 = inlined_call_operand.vmem [shape: f32[8,64], index: 6, kind: input, shape index: {}]
  %s7 = inlined_call_operand.vmem [shape: f32[8,1], index: 7, kind: input, shape index: {}]
  %s8 = inlined_call_operand.hbm [shape: f32[1,1,256], index: 8, kind: output, shape index: {}]
  %s9 = sld [smem:[#allocation0]]
  $region42: #{tpu_custom_call.1} parent=0
    _
  %s11 = ssub.s32 1, %s9
  %s12 = scalar_select 0, %s11, %s9
  $region1: #{tpu_custom_call.1} parent=0
    #allocation2 [shape = 'u8[1024]{0}', space=vmem, size = 0x400, scoped, tag = 'output window, operand 0, single buffered']
    #allocation3 [shape = 's32[1]{0}', space=sflag, size = 0x4, scoped, tag = 'scoped memory for tpu_custom_call.1']
    %13 = vsyncpa [#allocation3], 0
    // Predicated region
    $region2: #{tpu_custom_call.1} parent=1 // pred_check
      _
    $region3: #{tpu_custom_call.1} parent=1 // pred_check_branch
      %15 = sbr.rel (0) target = $region5
    $region4: #{tpu_custom_call.1} parent=1 // pred_region
      _
    $region5: #{tpu_custom_call.1} parent=1 // pred_fallthru
      _
    // Predicated region
    $region6: #{tpu_custom_call.1} parent=1 // pred_check
      _
    $region7: #{tpu_custom_call.1} parent=1 // pred_check_branch
      %17 = sbr.rel (0) target = $region9
    $region8: #{tpu_custom_call.1} parent=1 // pred_region
      _
    $region9: #{tpu_custom_call.1} parent=1 // pred_fallthru
      _
    // Predicated region
    $region10: #{tpu_custom_call.1} parent=1 // pred_check
      _
    $region11: #{tpu_custom_call.1} parent=1 // pred_check_branch
      %19 = sbr.rel (0) target = $region13
    $region12: #{tpu_custom_call.1} parent=1 // pred_region
      _
    $region13: #{tpu_custom_call.1} parent=1 // pred_fallthru
      _
    // Predicated region
    $region14: #{tpu_custom_call.1} parent=1 // pred_check
      _
    $region15: #{tpu_custom_call.1} parent=1 // pred_check_branch
      %21 = sbr.rel (0) target = $region17
    $region16: #{tpu_custom_call.1} parent=1 // pred_region
      _
    $region17: #{tpu_custom_call.1} parent=1 // pred_fallthru
      _
    // Predicated region
    $region18: #{tpu_custom_call.1} parent=1 // pred_check
      _
    $region19: #{tpu_custom_call.1} parent=1 // pred_check_branch
      %23 = sbr.rel (0) target = $region21
    $region20: #{tpu_custom_call.1} parent=1 // pred_region
      _
    $region21: #{tpu_custom_call.1} parent=1 // pred_fallthru
      _
    // Predicated region
    $region22: #{tpu_custom_call.1} parent=1 // pred_check
      _
    $region23: #{tpu_custom_call.1} parent=1 // pred_check_branch
      %25 = sbr.rel (0) target = $region25
    $region24: #{tpu_custom_call.1} parent=1 // pred_region
      _
    $region25: #{tpu_custom_call.1} parent=1 // pred_fallthru
      _
    // Predicated region
    $region26: #{tpu_custom_call.1} parent=1 // pred_check
      _
    $region27: #{tpu_custom_call.1} parent=1 // pred_check_branch
      %27 = sbr.rel (0) target = $region29
    $region28: #{tpu_custom_call.1} parent=1 // pred_region
      _
    $region29: #{tpu_custom_call.1} parent=1 // pred_fallthru
      _
    // Predicated region
    $region30: #{tpu_custom_call.1} parent=1 // pred_check
      _
    $region31: #{tpu_custom_call.1} parent=1 // pred_check_branch
      %29 = sbr.rel (0) target = $region33
    $region32: #{tpu_custom_call.1} parent=1 // pred_region
      _
    $region33: #{tpu_custom_call.1} parent=1 // pred_fallthru
      _
    %v30 = vld [vmem:[%s0] sm:$0xff]
    %v31 = vld [vmem:[%s0 + $0x8] sm:$0xff]
    %v32 = vld [vmem:[%s1] sm:$0xff]
    %v33 = vld [vmem:[%s1 + $0x8] sm:$0xff]
    %v34 = vld [vmem:[%s2] sm:$0xff]
    %36 = vset.pattern.permute.xlu0 0
    %37 = vperm.xlu0 %36, %v34
    %v38 = vpop.permute.xlu0 %37
    %v40 = vmul.f32 %v38, %v30
    %v41 = vmul.f32 %v38, %v31
    %v42 = vld [vmem:[%s3] sm:$0xff]
    %44 = vset.pattern.permute.xlu0 0
    %45 = vperm.xlu0 %44, %v42
    %v46 = vpop.permute.xlu0 %45
    %v48 = vmul.f32 %v46, %v32
    %v49 = vmul.f32 %v46, %v33
    %v50 = vadd.f32 %v40, %v48
    %v51 = vadd.f32 %v41, %v49
    %v52 = vld [vmem:[%s4] sm:$0xff]
    %v53 = vld [vmem:[%s4 + $0x8] sm:$0xff]
    %v54 = vld [vmem:[%s4 + $0x10] sm:$0xff]
    %v55 = vld [vmem:[%s4 + $0x18] sm:$0xff]
    %v56 = vld [vmem:[%s4 + $0x20] sm:$0xff]
    %v57 = vld [vmem:[%s4 + $0x28] sm:$0xff]
    %v58 = vld [vmem:[%s4 + $0x30] sm:$0xff]
    %v59 = vld [vmem:[%s4 + $0x38] sm:$0xff]
    %v60 = vld [vmem:[%s5] sm:$0xff]
    %v61 = vld [vmem:[%s5 + $0x8] sm:$0xff]
    %v62 = vld [vmem:[%s5 + $0x10] sm:$0xff]
    %v63 = vld [vmem:[%s5 + $0x18] sm:$0xff]
    %v64 = vld [vmem:[%s5 + $0x20] sm:$0xff]
    %v65 = vld [vmem:[%s5 + $0x28] sm:$0xff]
    %v66 = vld [vmem:[%s5 + $0x30] sm:$0xff]
    %v67 = vld [vmem:[%s5 + $0x38] sm:$0xff]
    %69 = vset.pattern.permute.xlu0 0
    %70 = vperm.xlu0 %69, %v60
    %v71 = vpop.permute.xlu0 %70
    %74 = vset.pattern.permute.xlu0 0
    %75 = vperm.xlu0 %74, %v61
    %v76 = vpop.permute.xlu0 %75
    %79 = vset.pattern.permute.xlu0 0
    %80 = vperm.xlu0 %79, %v62
    %v81 = vpop.permute.xlu0 %80
    %84 = vset.pattern.permute.xlu0 0
    %85 = vperm.xlu0 %84, %v63
    %v86 = vpop.permute.xlu0 %85
    %89 = vset.pattern.permute.xlu0 0
    %90 = vperm.xlu0 %89, %v64
    %v91 = vpop.permute.xlu0 %90
    %94 = vset.pattern.permute.xlu0 0
    %95 = vperm.xlu0 %94, %v65
    %v96 = vpop.permute.xlu0 %95
    %99 = vset.pattern.permute.xlu0 0
    %100 = vperm.xlu0 %99, %v66
    %v101 = vpop.permute.xlu0 %100
    %104 = vset.pattern.permute.xlu0 0
    %105 = vperm.xlu0 %104, %v67
    %v106 = vpop.permute.xlu0 %105
    %vm108 = vcmask 64512
    %v110 = vsel %vm108, %v52, 0
    %v113 = vsel %vm108, %v53, 0
    %v116 = vsel %vm108, %v54, 0
    %v119 = vsel %vm108, %v55, 0
    %v122 = vsel %vm108, %v56, 0
    %v125 = vsel %vm108, %v57, 0
    %v128 = vsel %vm108, %v58, 0
    %v131 = vsel %vm108, %v59, 0
    %133 = vmatpush.msra.mxu0 0.0
    %134 = vmatpush.msra.mxu0 0.0
    %135 = vmatpush.msra.mxu0 0.0
    %136 = vmatpush.msra.mxu0 0.0
    %137 = vmatpush.msra.mxu0 0.0
    %138 = vmatpush.msra.mxu0 0.0
    %139 = vmatpush.msra.mxu0 0.0
    %140 = vmatpush.msra.mxu0 0.0
    %141 = vmatpush.msra.mxu0 0.0
    %142 = vmatpush.msra.mxu0 0.0
    %143 = vmatpush.msra.mxu0 0.0
    %144 = vmatpush.msra.mxu0 0.0
    %145 = vmatpush.msra.mxu0 0.0
    %146 = vmatpush.msra.mxu0 0.0
    %147 = vmatpush.msra.mxu0 0.0
    %148 = vmatpush.msra.mxu0 %v50
    %149 = vmatmul.f32.gmra.mxu0 %v110
    %v150 = vpop.f32.mrf.mxu0
    %v151 = vadd.f32 %v71, %v150
    %152 = vmatmul.f32.gmra.mxu0 %v113
    %v153 = vpop.f32.mrf.mxu0
    %v154 = vadd.f32 %v76, %v153
    %155 = vmatmul.f32.gmra.mxu0 %v116
    %v156 = vpop.f32.mrf.mxu0
    %v157 = vadd.f32 %v81, %v156
    %158 = vmatmul.f32.gmra.mxu0 %v119
    %v159 = vpop.f32.mrf.mxu0
    %v160 = vadd.f32 %v86, %v159
    %161 = vmatmul.f32.gmra.mxu0 %v122
    %v162 = vpop.f32.mrf.mxu0
    %v163 = vadd.f32 %v91, %v162
    %164 = vmatmul.f32.gmra.mxu0 %v125
    %v165 = vpop.f32.mrf.mxu0
    %v166 = vadd.f32 %v96, %v165
    %167 = vmatmul.f32.gmra.mxu0 %v128
    %v168 = vpop.f32.mrf.mxu0
    %v169 = vadd.f32 %v101, %v168
    %170 = vmatmul.f32.gmra.mxu0 %v131
    %v171 = vpop.f32.mrf.mxu0
    %v172 = vadd.f32 %v106, %v171
    %173 = vdwg.mxu0
    %174 = vmatpush.msra.mxu0 0.0
    %175 = vmatpush.msra.mxu0 0.0
    %176 = vmatpush.msra.mxu0 0.0
    %177 = vmatpush.msra.mxu0 0.0
    %178 = vmatpush.msra.mxu0 0.0
    %179 = vmatpush.msra.mxu0 0.0
    %180 = vmatpush.msra.mxu0 0.0
    %181 = vmatpush.msra.mxu0 0.0
    %182 = vmatpush.msra.mxu0 0.0
    %183 = vmatpush.msra.mxu0 0.0
    %184 = vmatpush.msra.mxu0 0.0
    %185 = vmatpush.msra.mxu0 0.0
    %186 = vmatpush.msra.mxu0 0.0
    %187 = vmatpush.msra.mxu0 0.0
    %188 = vmatpush.msra.mxu0 0.0
    %189 = vmatpush.msra.mxu0 %v51
    %190 = vmatmul.f32.gmra.mxu0 %v110
    %v191 = vpop.f32.mrf.mxu0
    %v192 = vadd.f32 %v71, %v191
    %193 = vmatmul.f32.gmra.mxu0 %v113
    %v194 = vpop.f32.mrf.mxu0
    %v195 = vadd.f32 %v76, %v194
    %196 = vmatmul.f32.gmra.mxu0 %v116
    %v197 = vpop.f32.mrf.mxu0
    %v198 = vadd.f32 %v81, %v197
    %199 = vmatmul.f32.gmra.mxu0 %v119
    %v200 = vpop.f32.mrf.mxu0
    %v201 = vadd.f32 %v86, %v200
    %202 = vmatmul.f32.gmra.mxu0 %v122
    %v203 = vpop.f32.mrf.mxu0
    %v204 = vadd.f32 %v91, %v203
    %205 = vmatmul.f32.gmra.mxu0 %v125
    %v206 = vpop.f32.mrf.mxu0
    %v207 = vadd.f32 %v96, %v206
    %208 = vmatmul.f32.gmra.mxu0 %v128
    %v209 = vpop.f32.mrf.mxu0
    %v210 = vadd.f32 %v101, %v209
    %211 = vmatmul.f32.gmra.mxu0 %v131
    %v212 = vpop.f32.mrf.mxu0
    %v213 = vadd.f32 %v106, %v212
    %214 = vdwg.mxu0
    %v215 = vmax.f32 %v151, 0.0
    %v216 = vmax.f32 %v192, 0.0
    %v217 = vmax.f32 %v154, 0.0
    %v218 = vmax.f32 %v195, 0.0
    %v219 = vmax.f32 %v157, 0.0
    %v220 = vmax.f32 %v198, 0.0
    %v221 = vmax.f32 %v160, 0.0
    %v222 = vmax.f32 %v201, 0.0
    %v223 = vmax.f32 %v163, 0.0
    %v224 = vmax.f32 %v204, 0.0
    %v225 = vmax.f32 %v166, 0.0
    %v226 = vmax.f32 %v207, 0.0
    %v227 = vmax.f32 %v169, 0.0
    %v228 = vmax.f32 %v210, 0.0
    %v229 = vmax.f32 %v172, 0.0
    %v230 = vmax.f32 %v213, 0.0
    %v231 = vld [vmem:[%s6] sm:$0xff]
    %v232 = vld [vmem:[%s7] sm:$0xff]
    %234 = vset.pattern.permute.xlu0 0
    %235 = vperm.xlu0 %234, %v232
    %v236 = vpop.permute.xlu0 %235
    %vm238 = vcmask 523264
    %v240 = vsel %vm238, %v231, 0
    %242 = vmatpush.msra.mxu0 0.0
    %243 = vmatpush.msra.mxu0 0.0
    %244 = vmatpush.msra.mxu0 0.0
    %245 = vmatpush.msra.mxu0 0.0
    %246 = vmatpush.msra.mxu0 0.0
    %247 = vmatpush.msra.mxu0 0.0
    %248 = vmatpush.msra.mxu0 0.0
    %249 = vmatpush.msra.mxu0 0.0
    %250 = vmatpush.msra.mxu0 %v229
    %251 = vmatpush.msra.mxu0 %v227
    %252 = vmatpush.msra.mxu0 %v225
    %253 = vmatpush.msra.mxu0 %v223
    %254 = vmatpush.msra.mxu0 %v221
    %255 = vmatpush.msra.mxu0 %v219
    %256 = vmatpush.msra.mxu0 %v217
    %257 = vmatpush.msra.mxu0 %v215
    %258 = vmatmul.f32.gmra.mxu0 %v240
    %v259 = vpop.f32.mrf.mxu0
    %v260 = vadd.f32 %v236, %v259
    %261 = vdwg.mxu0
    %262 = vmatpush.msra.mxu0 0.0
    %263 = vmatpush.msra.mxu0 0.0
    %264 = vmatpush.msra.mxu0 0.0
    %265 = vmatpush.msra.mxu0 0.0
    %266 = vmatpush.msra.mxu0 0.0
    %267 = vmatpush.msra.mxu0 0.0
    %268 = vmatpush.msra.mxu0 0.0
    %269 = vmatpush.msra.mxu0 0.0
    %270 = vmatpush.msra.mxu0 %v230
    %271 = vmatpush.msra.mxu0 %v228
    %272 = vmatpush.msra.mxu0 %v226
    %273 = vmatpush.msra.mxu0 %v224
    %274 = vmatpush.msra.mxu0 %v222
    %275 = vmatpush.msra.mxu0 %v220
    %276 = vmatpush.msra.mxu0 %v218
    %277 = vmatpush.msra.mxu0 %v216
    %278 = vmatmul.f32.gmra.mxu0 %v240
    %v279 = vpop.f32.mrf.mxu0
    %v280 = vadd.f32 %v236, %v279
    %281 = vdwg.mxu0
    %v282 = vsub.f32 %v260, %v32
    %v283 = vsub.f32 %v280, %v33
    %v284 = vmul.f32 %v282, %v282
    %v285 = vmul.f32 %v283, %v283
    %v286 = vrot.slane %v284, 4
    %v287 = vadd.f32 %v284, %v286
    %v288 = vrot.slane %v287, 2
    %v289 = vadd.f32 %v287, %v288
    %v290 = vrot.slane %v289, 1
    %v291 = vadd.f32 %v289, %v290
    %v292 = vrot.slane %v285, 4
    %v293 = vadd.f32 %v285, %v292
    %v294 = vrot.slane %v293, 2
    %v295 = vadd.f32 %v293, %v294
    %v296 = vrot.slane %v295, 1
    %v297 = vadd.f32 %v295, %v296
    %v300 = vrot.slane %v297, 7
    %vm301 = vcmask 1040384
    %v302 = vsel %vm301, %v291, %v300
    %v304 = vlaneseq
    %vm305 = vcmp.ge.s32.totalorder %v304, 0
    %vm306 = vcmp.lt.s32.totalorder %v304, 256
    %vm307 = vmand %vm305, %vm306
    %308 = vst.msk [vmem:[#allocation2] sm:$0x3] %vm307, %v302
    // Predicated region
    $region34: #{tpu_custom_call.1} parent=1 // pred_check
      _
    $region35: #{tpu_custom_call.1} parent=1 // pred_check_branch
      %310 = sbr.rel (0) target = $region37
    $region36: #{tpu_custom_call.1} parent=1 // pred_region
      %312 = vsyncadd [#allocation3], 0
      %s314 = sshll.u32 [#allocation2], 4
      %s315 = int_to_ptr.vmem [resolvable:$true] %s314
      %s316 = sshll.u32 %s8, 4
      %s317 = int_to_ptr.hbm [resolvable:$true] %s316
      %319 = dma.vmem_to_hbm [thread:$0]  %s315, 32, %s317, [#allocation3]
    $region37: #{tpu_custom_call.1} parent=1 // pred_fallthru
      _
    // Predicated region
    $region38: #{tpu_custom_call.1} parent=1 // pred_check
      _
    $region39: #{tpu_custom_call.1} parent=1 // pred_check_branch
      %321 = sbr.rel (0) target = $region41
    $region40: #{tpu_custom_call.1} parent=1 // pred_region
      %323 = dma.done [#allocation3], 32
    $region41: #{tpu_custom_call.1} parent=1 // pred_fallthru
      _
    %324 = vsyncpa [#allocation3], 1

</llo_original>
